<compile_context>
chip_gen: v5e
topology: v5e:2x2
jax: 0.10.0
libtpu: 0.0.40
codegen_flags: <defaults>
</compile_context>

<pallas_src>
import jax
import jax.numpy as jnp
from jax.experimental import pallas as pl
from jax.experimental.pallas import tpu as pltpu


def se_kernel(x_ref, w1_ref, b1_ref, w2_ref, b2_ref, o_ref):
    # x_ref  : (B, C, HW)   activations, model dtype (f32 or bf16)
    # w1_ref : (C, HID)     se_reduce weight, (in_ch, out_ch), pre-scaled by 1/HW
    # b1_ref : (1, HID)
    # w2_ref : (HID, C)     se_expand weight, (in_ch, out_ch)
    # b2_ref : (1, C)
    # o_ref  : (B, C, HW)

    # Squeeze: spatial sum accumulated in f32; the 1/HW mean normalization is
    # folded into w1, so no per-step divide.
    pooled = jnp.sum(x_ref[...], axis=-1, dtype=jnp.float32)        # (B, C)

    # Excite: reduce -> ReLU -> expand -> sigmoid (tiny, f32).
    h = jnp.dot(pooled, w1_ref[...], preferred_element_type=jnp.float32) + b1_ref[...]
    h = jnp.maximum(h, 0.0)                                          # (B, HID)
    s = jnp.dot(h, w2_ref[...], preferred_element_type=jnp.float32) + b2_ref[...]
    gate = jax.nn.sigmoid(s).astype(o_ref.dtype)                     # (B, C)

    # Scale: re-read the VMEM window (don't hold a full-block temp live across
    # the reduction); broadcast the per-channel gate over the lane (spatial) axis.
    o_ref[...] = x_ref[...] * gate[:, :, None]


def _vmem_capacity_bytes():
    """Physical VMEM per TensorCore, or a conservative fallback (v7x = 64 MiB)."""
    try:
        info = pltpu.get_tpu_info()
        cap = getattr(info, "vmem_capacity_bytes", None)
        if cap:
            return int(cap)
    except Exception:
        pass
    return 64 << 20


def _largest_divisor_leq(n, cap):
    cap = max(1, min(n, cap))
    for d in range(cap, 0, -1):
        if n % d == 0:
            return d
    return 1


def squeeze_and_excitation(x, w_reduce, b_reduce, w_expand, b_expand,
                           *, block_batch=None, vmem_limit_bytes=None):
    """x: [N, C, H, W]; w_reduce: [HID, C, 1, 1]; w_expand: [C, HID, 1, 1]."""
    N, C, H, W = x.shape
    HID = w_reduce.shape[0]
    HW = H * W
    dtype = x.dtype

    # --- Generation-gated budgets -------------------------------------------
    vmem_cap = _vmem_capacity_bytes()
    big_vmem = vmem_cap >= (96 << 20)          # v5e / v6e: 128 MiB per TensorCore
    two_cores = not big_vmem                   # v7x: 64 MiB per TC, 2 TCs / chip
    if big_vmem:
        budget = 56 << 20                      # double-buffered in+out block budget
        default_limit = 96 << 20
    else:
        budget = 32 << 20
        default_limit = 56 << 20
    if vmem_limit_bytes is None:
        vmem_limit_bytes = default_limit

    # --- Batch-block selection (always a divisor of N: no batch padding) -----
    if block_batch is None:
        per_sample = 4 * C * HW * dtype.itemsize   # 2x in + 2x out buffers per sample
        cap = max(1, budget // max(per_sample, 1))
        if two_cores and N >= 4:
            # >= 2 grid steps per TensorCore: both cores busy + pipelined DMA.
            cap = min(cap, max(1, (N + 3) // 4))
        B = _largest_divisor_leq(N, cap)
    else:
        B = _largest_divisor_leq(N, block_batch)

    grid = (N // B,)

    # Free reshape (contiguous): no extra HBM pass, no lane padding, no slicing.
    x_flat = x.reshape(N, C, HW)

    # Conv weights in (in_ch, out_ch) matmul form; fold mean's 1/HW into w1.
    w1 = (w_reduce.reshape(HID, C).T / float(HW)).astype(jnp.float32)   # (C, HID)
    w2 = w_expand.reshape(C, HID).T.astype(jnp.float32)                 # (HID, C)
    b1 = b_reduce.reshape(1, HID).astype(jnp.float32)
    b2 = b_expand.reshape(1, C).astype(jnp.float32)

    out_flat = pl.pallas_call(
        se_kernel,
        out_shape=jax.ShapeDtypeStruct((N, C, HW), dtype),
        grid_spec=pltpu.PrefetchScalarGridSpec(
            num_scalar_prefetch=0,
            grid=grid,
            in_specs=[
                # Last two block dims equal the full array dims -> exempt from
                # the (8,128) divisibility rule; no masking games needed.
                pl.BlockSpec((B, C, HW), lambda n: (n, 0, 0)),
                pl.BlockSpec((C, HID), lambda n: (0, 0)),
                pl.BlockSpec((1, HID), lambda n: (0, 0)),
                pl.BlockSpec((HID, C), lambda n: (0, 0)),
                pl.BlockSpec((1, C), lambda n: (0, 0)),
            ],
            out_specs=pl.BlockSpec((B, C, HW), lambda n: (n, 0, 0)),
        ),
        compiler_params=pltpu.CompilerParams(
            dimension_semantics=("parallel",),
            vmem_limit_bytes=vmem_limit_bytes,
        ),
    )(x_flat, w1, b1, w2, b2)

    return out_flat.reshape(N, C, H, W)


def reference_se(x, w_reduce, b_reduce, w_expand, b_expand):
    # Pure-JAX reference matching the PyTorch forward (f32).
    se = jnp.mean(x, axis=(2, 3), keepdims=True)                  # [N, C, 1, 1]
    se = jnp.einsum('nchw,oc->nohw', se, w_reduce.reshape(w_reduce.shape[0], -1))
    se = se + b_reduce.reshape(1, -1, 1, 1)
    se = jnp.maximum(se, 0.0)
    se = jnp.einsum('nchw,oc->nohw', se, w_expand.reshape(w_expand.shape[0], -1))
    se = se + b_expand.reshape(1, -1, 1, 1)
    return jax.nn.sigmoid(se) * x


def _make_inputs(key, N, C, H, W, HID, dtype):
    k_x, k_w1, k_b1, k_w2, k_b2 = jax.random.split(key, 5)
    x = jax.random.normal(k_x, (N, C, H, W), dtype=jnp.float32).astype(dtype)
    w_reduce = 0.1 * jax.random.normal(k_w1, (HID, C, 1, 1), jnp.float32)
    b_reduce = 0.1 * jax.random.normal(k_b1, (HID,), jnp.float32)
    w_expand = 0.1 * jax.random.normal(k_w2, (C, HID, 1, 1), jnp.float32)
    b_expand = 0.1 * jax.random.normal(k_b2, (C,), jnp.float32)
    return x, w_reduce, b_reduce, w_expand, b_expand


if __name__ == "__main__":
    key = jax.random.PRNGKey(0)
    k1, k2, k3 = jax.random.split(key, 3)

    # Test 1: f32, lane-dense spatial (16x16), even batch.
    x, wr, br, we, be = _make_inputs(k1, N=2, C=4, H=16, W=16, HID=2, dtype=jnp.float32)
    out = jax.block_until_ready(squeeze_and_excitation(x, wr, br, we, be))
    ref = reference_se(x, wr, br, we, be)
    assert jnp.allclose(out, ref, atol=1e-5, rtol=1e-5), "f32 mismatch vs reference"

    # Test 2: f32, HW=49 (7x7) and N=3 -> no padding anywhere (full-extent block dims,
    # B chosen as a divisor of N).
    x, wr, br, we, be = _make_inputs(k2, N=3, C=8, H=7, W=7, HID=4, dtype=jnp.float32)
    out = jax.block_until_ready(squeeze_and_excitation(x, wr, br, we, be))
    ref = reference_se(x, wr, br, we, be)
    assert jnp.allclose(out, ref, atol=1e-5, rtol=1e-5), "f32 7x7 mismatch vs reference"

    # Test 3: bf16 activation I/O (f32 accumulation inside the kernel).
    x, wr, br, we, be = _make_inputs(k3, N=2, C=4, H=16, W=16, HID=2, dtype=jnp.bfloat16)
    out = jax.block_until_ready(squeeze_and_excitation(x, wr, br, we, be))
    ref = reference_se(x.astype(jnp.float32), wr, br, we, be)
    assert jnp.allclose(out.astype(jnp.float32), ref, atol=5e-2, rtol=2e-2), \
        "bf16 mismatch vs reference"

    print("KERNEL_OK")
</pallas_src>

<mosaic_0001>
module attributes {stable_mosaic.version = 11 : i64} {
  func.func @se_kernel(%arg0: i32, %arg1: memref<2x4x256xf32, #tpu.memory_space<vmem>>, %arg2: memref<4x2xf32, #tpu.memory_space<vmem>>, %arg3: memref<1x2xf32, #tpu.memory_space<vmem>>, %arg4: memref<2x4xf32, #tpu.memory_space<vmem>>, %arg5: memref<1x4xf32, #tpu.memory_space<vmem>>, %arg6: memref<2x4x256xf32, #tpu.memory_space<vmem>>) attributes {dimension_semantics = [#tpu.dimension_semantics<parallel>], iteration_bounds = array<i64: 1>, scalar_prefetch = 0 : i64, scratch_operands = 0 : i64, tpu.core_type = #tpu.core_type<tc>, window_params = [{transform_indices = @transform_0, window_bounds = array<i64: 2, 4, 256>}, {pipeline_mode = #tpu.pipeline_mode<synchronous>, transform_indices = @transform_1, window_bounds = array<i64: 4, 2>}, {pipeline_mode = #tpu.pipeline_mode<synchronous>, transform_indices = @transform_2, window_bounds = array<i64: 1, 2>}, {pipeline_mode = #tpu.pipeline_mode<synchronous>, transform_indices = @transform_3, window_bounds = array<i64: 2, 4>}, {pipeline_mode = #tpu.pipeline_mode<synchronous>, transform_indices = @transform_4, window_bounds = array<i64: 1, 4>}, {transform_indices = @transform_5, window_bounds = array<i64: 2, 4, 256>}]} {
    %c0 = arith.constant 0 : index
    %c0_0 = arith.constant 0 : index
    %c0_1 = arith.constant 0 : index
    %0 = vector.load %arg1[%c0, %c0_0, %c0_1] : memref<2x4x256xf32, #tpu.memory_space<vmem>>, vector<2x4x256xf32>
    %cst = arith.constant dense<0.000000e+00> : vector<2x4xf32>
    %1 = vector.multi_reduction <add>, %0, %cst [2] : vector<2x4x256xf32> to vector<2x4xf32>
    %c0_2 = arith.constant 0 : index
    %c0_3 = arith.constant 0 : index
    %2 = vector.load %arg2[%c0_2, %c0_3] : memref<4x2xf32, #tpu.memory_space<vmem>>, vector<4x2xf32>
    %cst_4 = arith.constant dense<0.000000e+00> : vector<2x2xf32>
    %3 = tpu.matmul %1, %2, %cst_4 {dimension_numbers = #tpu.dot_dimension_numbers<[1], [0], [0], [1], [0, 0, 1, 1], [], []>} : vector<2x4xf32>, vector<4x2xf32>, vector<2x2xf32> -> vector<2x2xf32>
    %c0_5 = arith.constant 0 : index
    %c0_6 = arith.constant 0 : index
    %4 = vector.load %arg3[%c0_5, %c0_6] : memref<1x2xf32, #tpu.memory_space<vmem>>, vector<1x2xf32>
    %5 = vector.broadcast %4 : vector<1x2xf32> to vector<2x2xf32>
    %6 = arith.addf %3, %5 : vector<2x2xf32>
    %cst_7 = arith.constant 0.000000e+00 : f32
    %7 = vector.broadcast %cst_7 : f32 to vector<2x2xf32>
    %8 = arith.maximumf %6, %7 : vector<2x2xf32>
    %c0_8 = arith.constant 0 : index
    %c0_9 = arith.constant 0 : index
    %9 = vector.load %arg4[%c0_8, %c0_9] : memref<2x4xf32, #tpu.memory_space<vmem>>, vector<2x4xf32>
    %cst_10 = arith.constant dense<0.000000e+00> : vector<2x4xf32>
    %10 = tpu.matmul %8, %9, %cst_10 {dimension_numbers = #tpu.dot_dimension_numbers<[1], [0], [0], [1], [0, 0, 1, 1], [], []>} : vector<2x2xf32>, vector<2x4xf32>, vector<2x4xf32> -> vector<2x4xf32>
    %c0_11 = arith.constant 0 : index
    %c0_12 = arith.constant 0 : index
    %11 = vector.load %arg5[%c0_11, %c0_12] : memref<1x4xf32, #tpu.memory_space<vmem>>, vector<1x4xf32>
    %12 = vector.broadcast %11 : vector<1x4xf32> to vector<2x4xf32>
    %13 = arith.addf %10, %12 : vector<2x4xf32>
    %14 = arith.negf %13 : vector<2x4xf32>
    %15 = math.exp %14 : vector<2x4xf32>
    %cst_13 = arith.constant 1.000000e+00 : f32
    %16 = vector.broadcast %cst_13 : f32 to vector<2x4xf32>
    %17 = arith.addf %16, %15 : vector<2x4xf32>
    %18 = arith.divf %16, %17 : vector<2x4xf32>
    %c0_14 = arith.constant 0 : index
    %c0_15 = arith.constant 0 : index
    %c0_16 = arith.constant 0 : index
    %19 = vector.load %arg1[%c0_14, %c0_15, %c0_16] : memref<2x4x256xf32, #tpu.memory_space<vmem>>, vector<2x4x256xf32>
    %20 = vector.shape_cast %18 : vector<2x4xf32> to vector<2x4x1xf32>
    %21 = vector.broadcast %20 : vector<2x4x1xf32> to vector<2x4x256xf32>
    %22 = arith.mulf %19, %21 : vector<2x4x256xf32>
    %c0_17 = arith.constant 0 : index
    %c0_18 = arith.constant 0 : index
    %c0_19 = arith.constant 0 : index
    %23 = vector.load %arg6[%c0_17, %c0_18, %c0_19] : memref<2x4x256xf32, #tpu.memory_space<vmem>>, vector<2x4x256xf32>
    tpu.vector_store %arg6[%c0_17, %c0_18, %c0_19], %22 {strides = array<i32>} : memref<2x4x256xf32, #tpu.memory_space<vmem>>, vector<2x4x256xf32>,
    return
  }
  func.func @transform_0(%arg0: i32) -> (i32, i32, i32) {
    %c0_i32 = arith.constant 0 : i32
    %c0_i32_0 = arith.constant 0 : i32
    %c0_i32_1 = arith.constant 0 : i32
    return %arg0, %c0_i32, %c0_i32_0 : i32, i32, i32
  }
  func.func @transform_1(%arg0: i32) -> (i32, i32) {
    %c0_i32 = arith.constant 0 : i32
    %c0_i32_0 = arith.constant 0 : i32
    %c0_i32_1 = arith.constant 0 : i32
    return %c0_i32, %c0_i32_0 : i32, i32
  }
  func.func @transform_2(%arg0: i32) -> (i32, i32) {
    %c0_i32 = arith.constant 0 : i32
    %c0_i32_0 = arith.constant 0 : i32
    %c0_i32_1 = arith.constant 0 : i32
    return %c0_i32, %c0_i32_0 : i32, i32
  }
  func.func @transform_3(%arg0: i32) -> (i32, i32) {
    %c0_i32 = arith.constant 0 : i32
    %c0_i32_0 = arith.constant 0 : i32
    %c0_i32_1 = arith.constant 0 : i32
    return %c0_i32, %c0_i32_0 : i32, i32
  }
  func.func @transform_4(%arg0: i32) -> (i32, i32) {
    %c0_i32 = arith.constant 0 : i32
    %c0_i32_0 = arith.constant 0 : i32
    %c0_i32_1 = arith.constant 0 : i32
    return %c0_i32, %c0_i32_0 : i32, i32
  }
  func.func @transform_5(%arg0: i32) -> (i32, i32, i32) {
    %c0_i32 = arith.constant 0 : i32
    %c0_i32_0 = arith.constant 0 : i32
    %c0_i32_1 = arith.constant 0 : i32
    return %arg0, %c0_i32, %c0_i32_0 : i32, i32, i32
  }
}

</mosaic_0001>

<llo_original>
// kernel: tpu_custom_call.1
$region0: #{tpu_custom_call.1}
  #allocation0 [shape = 'u32[]', space=smem, size = 0x4, offset = 0x4, fixed_abs, tag = 'smem constant byte address 0x4 - core index']
  #allocation1 [shape = 'u32[72,128]{1,0:T(1,128)}', space=vmem, size = 0x9000, scoped, tag = 'internal scratch']
  %s0 = inlined_call_operand.hbm [shape: f32[2,4,256], index: 0, kind: input, shape index: {}]
  %s1 = inlined_call_operand.vmem [shape: f32[4,2], index: 1, kind: input, shape index: {}]
  %s2 = inlined_call_operand.vmem [shape: f32[1,2], index: 2, kind: input, shape index: {}]
  %s3 = inlined_call_operand.vmem [shape: f32[2,4], index: 3, kind: input, shape index: {}]
  %s4 = inlined_call_operand.vmem [shape: f32[1,4], index: 4, kind: input, shape index: {}]
  %s5 = inlined_call_operand.hbm [shape: f32[2,4,256], index: 5, kind: output, shape index: {}]
  %s6 = sld [smem:[#allocation0]]
  $region34: #{tpu_custom_call.1} parent=0
    _
  %s8 = ssub.s32 1, %s6
  %s9 = scalar_select 0, %s8, %s6
  $region1: #{tpu_custom_call.1} parent=0
    #allocation2 [shape = 'u8[8192]{0}', space=vmem, size = 0x2000, scoped, tag = 'input window, operand 0, single buffered']
    #allocation3 [shape = 's32[1]{0}', space=sflag, size = 0x4, scoped, tag = 'scoped memory for tpu_custom_call.1']
    #allocation4 [shape = 's32[1]{0}', space=sflag, size = 0x4, scoped, tag = 'scoped memory for tpu_custom_call.1']
    #allocation5 [shape = 'u8[8192]{0}', space=vmem, size = 0x2000, scoped, tag = 'output window, operand 0, single buffered']
    %10 = vsyncpa [#allocation3], 0
    %11 = vsyncpa [#allocation4], 0
    // Predicated region
    $region2: #{tpu_custom_call.1} parent=1 // pred_check
      _
    $region3: #{tpu_custom_call.1} parent=1 // pred_check_branch
      %13 = sbr.rel (0) target = $region5
    $region4: #{tpu_custom_call.1} parent=1 // pred_region
      %15 = vsyncadd [#allocation3], 0
      %s16 = sshll.u32 %s0, 4
      %s17 = int_to_ptr.hbm [resolvable:$true] %s16
      %s18 = sshll.u32 [#allocation2], 4
      %s19 = int_to_ptr.vmem [resolvable:$true] %s18
      %24 = dma.hbm_to_vmem [thread:$0]  %s17, 256, %s19, [#allocation3], 128, 128, 8
    $region5: #{tpu_custom_call.1} parent=1 // pred_fallthru
      _
    // Predicated region
    $region6: #{tpu_custom_call.1} parent=1 // pred_check
      _
    $region7: #{tpu_custom_call.1} parent=1 // pred_check_branch
      %26 = sbr.rel (0) target = $region9
    $region8: #{tpu_custom_call.1} parent=1 // pred_region
      _
    $region9: #{tpu_custom_call.1} parent=1 // pred_fallthru
      _
    // Predicated region
    $region10: #{tpu_custom_call.1} parent=1 // pred_check
      _
    $region11: #{tpu_custom_call.1} parent=1 // pred_check_branch
      %28 = sbr.rel (0) target = $region13
    $region12: #{tpu_custom_call.1} parent=1 // pred_region
      _
    $region13: #{tpu_custom_call.1} parent=1 // pred_fallthru
      _
    // Predicated region
    $region14: #{tpu_custom_call.1} parent=1 // pred_check
      _
    $region15: #{tpu_custom_call.1} parent=1 // pred_check_branch
      %30 = sbr.rel (0) target = $region17
    $region16: #{tpu_custom_call.1} parent=1 // pred_region
      _
    $region17: #{tpu_custom_call.1} parent=1 // pred_fallthru
      _
    // Predicated region
    $region18: #{tpu_custom_call.1} parent=1 // pred_check
      _
    $region19: #{tpu_custom_call.1} parent=1 // pred_check_branch
      %32 = sbr.rel (0) target = $region21
    $region20: #{tpu_custom_call.1} parent=1 // pred_region
      _
    $region21: #{tpu_custom_call.1} parent=1 // pred_fallthru
      _
    // Predicated region
    $region22: #{tpu_custom_call.1} parent=1 // pred_check
      _
    $region23: #{tpu_custom_call.1} parent=1 // pred_check_branch
      %34 = sbr.rel (0) target = $region25
    $region24: #{tpu_custom_call.1} parent=1 // pred_region
      %36 = dma.done [#allocation3], 256
    $region25: #{tpu_custom_call.1} parent=1 // pred_fallthru
      _
    %v37 = vld [vmem:[#allocation2] sm:$0xff]
    %v38 = vld [vmem:[#allocation2 + $0x8] sm:$0xff]
    %41 = vst [vmem:[#allocation1] ss:$2 sm:$0xff] %v37
    %v42 = vld.sshfl [vmem:[#allocation1] sm:$0xff pattern:$0x75316420]
    %v43 = vld.sshfl [vmem:[#allocation1 + $0x8] sm:$0xff pattern:$0x75316420]
    %s44 = scalar_lea.vmem [#allocation1], 16
    %45 = vst [vmem:[%s44] ss:$2 sm:$0xff] %v38
    %v46 = vld.sshfl [vmem:[#allocation1 + $0x10] sm:$0xff pattern:$0x75316420]
    %v47 = vld.sshfl [vmem:[#allocation1 + $0x18] sm:$0xff pattern:$0x75316420]
    %vm52 = vcmask 1043456
    %v53 = vsel %vm52, %v42, 0.0
    %v54 = vsel %vm52, %v43, 0.0
    %v55 = vadd.f32 %v53, %v54
    %56 = vadd.xlane.f32.xlu0 %v55
    %v57 = vpop.xlane.xlu0 %56
    %v58 = vsel %vm52, %v46, 0.0
    %v59 = vsel %vm52, %v47, 0.0
    %v60 = vadd.f32 %v58, %v59
    %61 = vadd.xlane.f32.xlu0 %v60
    %v62 = vpop.xlane.xlu0 %61
    %v63 = vld [vmem:[%s1] sm:$0xf]
    %v64 = vld [vmem:[%s2] sm:$0x1]
    %v66 = vperm.slane %v64, 0
    %v70 = vlaneseq
    %v71 = vand.u32 %v70, 127
    %v72 = vperm.slane %v57, %v71
    %v73 = vperm.slane %v62, %v71
    %vm74 = vcmask 1041409
    %v75 = vsel %vm74, %v73, %v72
    %vm76 = vcmask 31744
    %v77 = vsel %vm76, %v75, 0
    %v80 = vsel %vm52, %v63, 0
    %82 = vmatpush.msra.mxu0 0.0
    %83 = vmatpush.msra.mxu0 0.0
    %84 = vmatpush.msra.mxu0 0.0
    %85 = vmatpush.msra.mxu0 0.0
    %86 = vmatpush.msra.mxu0 0.0
    %87 = vmatpush.msra.mxu0 0.0
    %88 = vmatpush.msra.mxu0 0.0
    %89 = vmatpush.msra.mxu0 0.0
    %90 = vmatpush.msra.mxu0 0.0
    %91 = vmatpush.msra.mxu0 0.0
    %92 = vmatpush.msra.mxu0 0.0
    %93 = vmatpush.msra.mxu0 0.0
    %94 = vmatpush.msra.mxu0 0.0
    %95 = vmatpush.msra.mxu0 0.0
    %96 = vmatpush.msra.mxu0 0.0
    %97 = vmatpush.msra.mxu0 %v80
    %98 = vmatmul.f32.gmra.mxu0 %v77
    %v99 = vpop.f32.mrf.mxu0
    %v100 = vadd.f32 %v66, %v99
    %101 = vdwg.mxu0
    %v102 = vmax.f32 %v100, 0.0
    %v103 = vld [vmem:[%s3] sm:$0x3]
    %v104 = vld [vmem:[%s4] sm:$0x1]
    %v106 = vperm.slane %v104, 0
    %vm108 = vcmask 15360
    %v110 = vsel %vm108, %v102, 0
    %vm112 = vcmask 1041408
    %v114 = vsel %vm112, %v103, 0
    %116 = vmatpush.msra.mxu0 0.0
    %117 = vmatpush.msra.mxu0 0.0
    %118 = vmatpush.msra.mxu0 0.0
    %119 = vmatpush.msra.mxu0 0.0
    %120 = vmatpush.msra.mxu0 0.0
    %121 = vmatpush.msra.mxu0 0.0
    %122 = vmatpush.msra.mxu0 0.0
    %123 = vmatpush.msra.mxu0 0.0
    %124 = vmatpush.msra.mxu0 0.0
    %125 = vmatpush.msra.mxu0 0.0
    %126 = vmatpush.msra.mxu0 0.0
    %127 = vmatpush.msra.mxu0 0.0
    %128 = vmatpush.msra.mxu0 0.0
    %129 = vmatpush.msra.mxu0 0.0
    %130 = vmatpush.msra.mxu0 0.0
    %131 = vmatpush.msra.mxu0 %v114
    %132 = vmatmul.f32.gmra.mxu0 %v110
    %v133 = vpop.f32.mrf.mxu0
    %v134 = vadd.f32 %v106, %v133
    %135 = vdwg.mxu0
    %v136 = vxor.u32 %v134, 2147483648
    %v137 = vmul.f32 %v136, 1.442695
    %v138 = vpow.pop %v137
    %v139 = vadd.f32 %v138, 1.0
    %v140 = vrcp.pop %v139
    %v141 = vmul.f32 %v139, %v140
    %v142 = vsub.f32 1.0, %v141
    %v143 = vmul.f32 %v140, %v142
    %v144 = vadd.f32 %v140, %v143
    %vm145 = vweird.f32 %v139
    %vm146 = vweird.f32 %v140
    %vm147 = vmor %vm145, %vm146
    %v148 = vsel %vm147, %v140, %v144
    %v149 = vand.u32 2147483647, %v139
    %vm150 = vcmp.eq.f32.partialorder %v149, 8.507059e+37
    %v151 = vand.u32 %v139, 2147483648
    %v152 = vor.u32 1.1754944e-38, %v151
    %v153 = vsel %vm150, %v152, %v148
    %v154 = vmul.f32 1.0, %v153
    %v155 = vperm.slane %v154, 0
    %v156 = vlaneseq
    %v157 = vshrl.u32 %v156, 7
    %159 = vset.pattern.permute.xlu0 %v157
    %160 = vperm.xlu0 %159, %v155
    %v161 = vpop.permute.xlu0 %160
    %v162 = vperm.slane %v154, 1
    %v163 = vlaneseq
    %v164 = vshrl.u32 %v163, 7
    %166 = vset.pattern.permute.xlu0 %v164
    %167 = vperm.xlu0 %166, %v162
    %v168 = vpop.permute.xlu0 %167
    %v172 = vunpack.c.l.s4 839922192
    %v173 = vunpack.c.0.s8 %v172
    %v174 = vperm.slane %v161, %v173
    %v176 = vunpack.c.l.s4 839922192
    %v177 = vunpack.c.0.s8 %v176
    %v178 = vperm.slane %v168, %v177
    %v181 = vmul.f32 %v37, %v174
    %v182 = vmul.f32 %v38, %v178
    %183 = vst [vmem:[#allocation5] sm:$0xff] %v181
    %184 = vst [vmem:[#allocation5 + $0x8] sm:$0xff] %v182
    // Predicated region
    $region26: #{tpu_custom_call.1} parent=1 // pred_check
      _
    $region27: #{tpu_custom_call.1} parent=1 // pred_check_branch
      %186 = sbr.rel (0) target = $region29
    $region28: #{tpu_custom_call.1} parent=1 // pred_region
      %188 = vsyncadd [#allocation4], 0
      %s189 = sshll.u32 [#allocation5], 4
      %s190 = int_to_ptr.vmem [resolvable:$true] %s189
      %s191 = sshll.u32 %s5, 4
      %s192 = int_to_ptr.hbm [resolvable:$true] %s191
      %197 = dma.vmem_to_hbm [thread:$0]  %s190, 256, %s192, [#allocation4], 128, 128, 8
    $region29: #{tpu_custom_call.1} parent=1 // pred_fallthru
      _
    // Predicated region
    $region30: #{tpu_custom_call.1} parent=1 // pred_check
      _
    $region31: #{tpu_custom_call.1} parent=1 // pred_check_branch
      %199 = sbr.rel (0) target = $region33
    $region32: #{tpu_custom_call.1} parent=1 // pred_region
      %201 = dma.done [#allocation4], 256
    $region33: #{tpu_custom_call.1} parent=1 // pred_fallthru
      _
    %202 = vsyncpa [#allocation3], 1
    %203 = vsyncpa [#allocation4], 1

</llo_original>
